<compile_context>
chip_gen: v6e
topology: v6e:2x2x1
jax: 0.10.0
libtpu: 0.0.40
codegen_flags: <defaults>
</compile_context>

<pallas_src>
import functools

import jax
import jax.numpy as jnp
from jax.experimental import pallas as pl
from jax.experimental.pallas import tpu as pltpu


def _round_up(v, m):
    return ((v + m - 1) // m) * m


def _gcn_vae_kernel(s_ref, adj_ref, b_ref, drop_ref, eps_ref, out_ref, acc_ref,
                    *, nhid_p):
    """One (row-tile, k-tile) step of the fused GCN-VAE forward.

    s_ref    : VMEM (TK, HC)      pre-computed x @ [W1|W2] contraction tile
    adj_ref  : VMEM (TM, TK)      adjacency tile (the only O(N^2) stream)
    b_ref    : VMEM (1, HC)       [b1 | b2] (zero padded)
    drop_ref : VMEM (TM, HC) or (1, HC)   inverted-dropout scale (1/keep or 0)
    eps_ref  : VMEM (TM, NHP)     reparameterization noise
    out_ref  : VMEM (TM, 3*NHP)   lane-dense [z | mu | std] slab
    acc_ref  : VMEM (TM, HC) f32  accumulator over the K grid axis
    """
    k = pl.program_id(1)

    @pl.when(k == 0)
    def _():
        acc_ref[...] = jnp.zeros_like(acc_ref)

    # Fused pair of GraphConvolutions: acc += adj_tile @ [s1 | s2]
    acc_ref[...] += jnp.dot(adj_ref[...], s_ref[...],
                            preferred_element_type=jnp.float32)

    @pl.when(k == pl.num_programs(1) - 1)
    def _():
        a = jnp.maximum(acc_ref[...] + b_ref[...], 0.0)   # ReLU, both branches
        a = a * drop_ref[...]                             # inverted dropout (1s in eval)
        mu = a[:, :nhid_p]
        std = jnp.exp(0.5 * a[:, nhid_p:])                # sqrt(exp(v)) == exp(v/2)
        z = mu + std * eps_ref[...]                       # Normal(mu, std).rsample()
        # Direct lane-aligned stores (NHP is a multiple of 128 by default).
        out_ref[:, 0 * nhid_p:1 * nhid_p] = z
        out_ref[:, 1 * nhid_p:2 * nhid_p] = mu
        out_ref[:, 2 * nhid_p:3 * nhid_p] = std


def gcn_vae_forward(x, adj, w1, b1, w2, b2, *, dropout=0.5, training=True,
                    seed=0, compute_dtype=jnp.bfloat16, nhid_pad=128):
    """Fused GCN-VAE forward.  Returns (z, mu, var) like the PyTorch module
    (the returned `var` is the std produced by exp(.).sqrt()).

    nhid_pad=128 fills the 256-wide MXU on v6e/v7x and lane-aligns the output
    slab; use nhid_pad=64 on v5e (128-wide MXU).
    """
    x = jnp.asarray(x, jnp.float32)
    adj = jnp.asarray(adj, jnp.float32)
    N, nfeat = x.shape
    nhid = jnp.asarray(w1).shape[-1]

    NHP = _round_up(nhid, nhid_pad)      # per-branch padded width
    HC = 2 * NHP                         # fused [branch1 | branch2] width
    OW = 3 * NHP                         # [z | mu | std] output slab width

    # Row / contraction tiling.  Small graphs: one tile.  Large graphs: 256x256
    # bf16 tiles keep VMEM well under the v7x 64 MiB budget while amortizing the
    # per-step pipeline overhead.
    NP0 = _round_up(N, 8)
    if NP0 <= 256:
        TM = TK = NP = NP0
    else:
        TM = TK = 256
        NP = _round_up(N, 256)

    cdt = compute_dtype
    keep = 1.0 - float(dropout)
    apply_dropout = bool(training) and float(dropout) > 0.0

    # Fused parameters: [W1 | W2], [b1 | b2], zero-padded to lane-dense HC.
    w_cat = (jnp.zeros((nfeat, HC), jnp.float32)
             .at[:, :nhid].set(jnp.asarray(w1, jnp.float32))
             .at[:, NHP:NHP + nhid].set(jnp.asarray(w2, jnp.float32)))
    b_cat = (jnp.zeros((1, HC), jnp.float32)
             .at[:, :nhid].set(jnp.asarray(b1, jnp.float32).reshape(1, -1))
             .at[:, NHP:NHP + nhid].set(jnp.asarray(b2, jnp.float32).reshape(1, -1)))

    # First matmul hoisted out of the per-tile grid: computed once here.
    s = jnp.dot(x.astype(cdt), w_cat.astype(cdt),
                preferred_element_type=jnp.float32).astype(cdt)

    # Pad the node axis only when necessary (avoid an O(N^2) copy otherwise).
    if NP != N:
        adj_c = jnp.zeros((NP, NP), cdt).at[:N, :N].set(adj.astype(cdt))
        s_c = jnp.zeros((NP, HC), cdt).at[:N, :].set(s)
    else:
        adj_c = adj.astype(cdt)
        s_c = s

    # Dropout scale + reparameterization noise (wrapper-side jax.random; the
    # in-kernel pltpu PRNG does not lower under interpret mode).  Both streams
    # are O(N*nhid), negligible next to the O(N^2) adjacency stream.
    key = jax.random.PRNGKey(int(seed))
    k_drop, k_eps = jax.random.split(key, 2)
    eps = jax.random.normal(k_eps, (NP, NHP), jnp.float32)
    if apply_dropout:
        u = jax.random.uniform(k_drop, (NP, HC), jnp.float32)
        drop = jnp.where(u < keep, jnp.float32(1.0 / keep), jnp.float32(0.0))
        drop_spec = pl.BlockSpec((TM, HC), lambda i, k: (i, 0))
    else:
        drop = jnp.ones((1, HC), jnp.float32)
        drop_spec = pl.BlockSpec((1, HC), lambda i, k: (0, 0))

    kernel = functools.partial(_gcn_vae_kernel, nhid_p=NHP)

    out = pl.pallas_call(
        kernel,
        out_shape=jax.ShapeDtypeStruct((NP, OW), jnp.float32),
        grid=(NP // TM, NP // TK),
        in_specs=[
            pl.BlockSpec((TK, HC), lambda i, k: (k, 0)),    # s  (K-tiled)
            pl.BlockSpec((TM, TK), lambda i, k: (i, k)),    # adj tile
            pl.BlockSpec((1, HC), lambda i, k: (0, 0)),     # [b1|b2]
            drop_spec,                                      # dropout scale
            pl.BlockSpec((TM, NHP), lambda i, k: (i, 0)),   # eps
        ],
        out_specs=pl.BlockSpec((TM, OW), lambda i, k: (i, 0)),
        scratch_shapes=[pltpu.VMEM((TM, HC), jnp.float32)],
        compiler_params=pltpu.CompilerParams(
            dimension_semantics=("parallel", "arbitrary")),
    )(s_c, adj_c, b_cat, drop, eps)

    z = out[:N, 0 * NHP:0 * NHP + nhid]
    mu = out[:N, 1 * NHP:1 * NHP + nhid]
    var = out[:N, 2 * NHP:2 * NHP + nhid]   # std, as in the reference module
    return z, mu, var


if __name__ == "__main__":
    key = jax.random.PRNGKey(0)
    k_x, k_adj, k_w1, k_b1, k_w2, k_b2 = jax.random.split(key, 6)

    # Small, forward-consistent shapes.
    N, nfeat, nhid = 8, 16, 32
    dropout_p = 0.5

    # Node features and a symmetric row-normalized adjacency (deterministic).
    x = jax.random.normal(k_x, (N, nfeat), dtype=jnp.float32)
    a = jax.random.uniform(k_adj, (N, N), dtype=jnp.float32)
    a = (a + a.T) * 0.5 + jnp.eye(N, dtype=jnp.float32)
    adj = a / jnp.sum(a, axis=1, keepdims=True)

    # GraphConvolution parameters (uniform init like Kipf's GCN).
    bound = 1.0 / jnp.sqrt(jnp.float32(nhid))
    w1 = jax.random.uniform(k_w1, (nfeat, nhid), jnp.float32, -bound, bound)
    b1 = jax.random.uniform(k_b1, (1, nhid), jnp.float32, -bound, bound)
    w2 = jax.random.uniform(k_w2, (nfeat, nhid), jnp.float32, -bound, bound)
    b2 = jax.random.uniform(k_b2, (1, nhid), jnp.float32, -bound, bound)

    # Dense references.
    ref_mu = jnp.maximum(adj @ (x @ w1) + b1, 0.0)
    ref_sd = jnp.exp(0.5 * jnp.maximum(adj @ (x @ w2) + b2, 0.0))

    # --- eval mode, f32 compute: exact check on mu / std --------------------
    z, mu, var = jax.block_until_ready(
        gcn_vae_forward(x, adj, w1, b1, w2, b2, dropout=dropout_p,
                        training=False, seed=0, compute_dtype=jnp.float32))
    assert z.shape == (N, nhid) and mu.shape == (N, nhid) and var.shape == (N, nhid)
    assert bool(jnp.allclose(mu, ref_mu, atol=1e-4, rtol=1e-4))
    assert bool(jnp.allclose(var, ref_sd, atol=1e-4, rtol=1e-4))
    assert bool(jnp.all(jnp.isfinite(z)))

    # --- training mode, f32 compute: per-element dropout-compatible check ---
    keep = 1.0 - dropout_p
    zt, mut, vart = jax.block_until_ready(
        gcn_vae_forward(x, adj, w1, b1, w2, b2, dropout=dropout_p,
                        training=True, seed=0, compute_dtype=jnp.float32))
    ref_mu_k = ref_mu / keep
    ref_sd_k = jnp.exp(0.5 * jnp.maximum(adj @ (x @ w2) + b2, 0.0) / keep)
    tol = 1e-3
    ok_mu = (jnp.abs(mut) <= tol) | (jnp.abs(mut - ref_mu_k) <= tol * (1.0 + jnp.abs(ref_mu_k)))
    ok_sd = (jnp.abs(vart - 1.0) <= tol) | (jnp.abs(vart - ref_sd_k) <= tol * (1.0 + jnp.abs(ref_sd_k)))
    assert bool(jnp.all(ok_mu)) and bool(jnp.all(ok_sd))
    assert bool(jnp.all(jnp.isfinite(zt))) and bool(jnp.all(vart > 0.0))

    # --- default path (bf16 adj/s compute): sanity --------------------------
    zb, mub, varb = jax.block_until_ready(
        gcn_vae_forward(x, adj, w1, b1, w2, b2, dropout=dropout_p,
                        training=True, seed=0))
    assert zb.shape == (N, nhid) and mub.shape == (N, nhid) and varb.shape == (N, nhid)
    assert bool(jnp.all(jnp.isfinite(zb))) and bool(jnp.all(varb > 0.0))

    print("KERNEL_OK")
</pallas_src>

<mosaic_0001>
module attributes {stable_mosaic.version = 11 : i64} {
  func.func @_gcn_vae_kernel(%arg0: i32, %arg1: i32, %arg2: memref<8x256xf32, #tpu.memory_space<vmem>>, %arg3: memref<8x8xf32, #tpu.memory_space<vmem>>, %arg4: memref<1x256xf32, #tpu.memory_space<vmem>>, %arg5: memref<1x256xf32, #tpu.memory_space<vmem>>, %arg6: memref<8x128xf32, #tpu.memory_space<vmem>>, %arg7: memref<8x384xf32, #tpu.memory_space<vmem>>, %arg8: memref<8x256xf32, #tpu.memory_space<vmem>>) attributes {dimension_semantics = [#tpu.dimension_semantics<parallel>, #tpu.dimension_semantics<arbitrary>], iteration_bounds = array<i64: 1, 1>, scalar_prefetch = 0 : i64, scratch_operands = 1 : i64, tpu.core_type = #tpu.core_type<tc>, window_params = [{transform_indices = @transform_0, window_bounds = array<i64: 8, 256>}, {transform_indices = @transform_1, window_bounds = array<i64: 8, 8>}, {pipeline_mode = #tpu.pipeline_mode<synchronous>, transform_indices = @transform_2, window_bounds = array<i64: 1, 256>}, {pipeline_mode = #tpu.pipeline_mode<synchronous>, transform_indices = @transform_3, window_bounds = array<i64: 1, 256>}, {transform_indices = @transform_4, window_bounds = array<i64: 8, 128>}, {transform_indices = @transform_5, window_bounds = array<i64: 8, 384>}]} {
    %c0_i32 = arith.constant 0 : i32
    %0 = arith.cmpi eq, %arg1, %c0_i32 : i32
    %1 = arith.extui %0 : i1 to i32
    %c0_i32_0 = arith.constant 0 : i32
    %2 = arith.cmpi ne, %1, %c0_i32_0 : i32
    scf.if %2 {
      %cst_10 = arith.constant 0.000000e+00 : f32
      %12 = vector.broadcast %cst_10 : f32 to vector<8x256xf32>
      %c0_11 = arith.constant 0 : index
      %c0_12 = arith.constant 0 : index
      %13 = vector.load %arg8[%c0_11, %c0_12] : memref<8x256xf32, #tpu.memory_space<vmem>>, vector<8x256xf32>
      tpu.vector_store %arg8[%c0_11, %c0_12], %12 {strides = array<i32>} : memref<8x256xf32, #tpu.memory_space<vmem>>, vector<8x256xf32>,
    } else {
    }
    %c0 = arith.constant 0 : index
    %c0_1 = arith.constant 0 : index
    %3 = vector.load %arg8[%c0, %c0_1] : memref<8x256xf32, #tpu.memory_space<vmem>>, vector<8x256xf32>
    %c0_2 = arith.constant 0 : index
    %c0_3 = arith.constant 0 : index
    %4 = vector.load %arg3[%c0_2, %c0_3] : memref<8x8xf32, #tpu.memory_space<vmem>>, vector<8x8xf32>
    %c0_4 = arith.constant 0 : index
    %c0_5 = arith.constant 0 : index
    %5 = vector.load %arg2[%c0_4, %c0_5] : memref<8x256xf32, #tpu.memory_space<vmem>>, vector<8x256xf32>
    %cst = arith.constant dense<0.000000e+00> : vector<8x256xf32>
    %6 = tpu.matmul %4, %5, %cst {dimension_numbers = #tpu.dot_dimension_numbers<[1], [0], [0], [1], [0, 0, 1, 1], [], []>} : vector<8x8xf32>, vector<8x256xf32>, vector<8x256xf32> -> vector<8x256xf32>
    %7 = arith.addf %3, %6 : vector<8x256xf32>
    %c0_6 = arith.constant 0 : index
    %c0_7 = arith.constant 0 : index
    %8 = vector.load %arg8[%c0_6, %c0_7] : memref<8x256xf32, #tpu.memory_space<vmem>>, vector<8x256xf32>
    tpu.vector_store %arg8[%c0_6, %c0_7], %7 {strides = array<i32>} : memref<8x256xf32, #tpu.memory_space<vmem>>, vector<8x256xf32>,
    %c0_i32_8 = arith.constant 0 : i32
    %9 = arith.cmpi eq, %arg1, %c0_i32_8 : i32
    %10 = arith.extui %9 : i1 to i32
    %c0_i32_9 = arith.constant 0 : i32
    %11 = arith.cmpi ne, %10, %c0_i32_9 : i32
    scf.if %11 {
      %c0_10 = arith.constant 0 : index
      %c0_11 = arith.constant 0 : index
      %12 = vector.load %arg8[%c0_10, %c0_11] : memref<8x256xf32, #tpu.memory_space<vmem>>, vector<8x256xf32>
      %c0_12 = arith.constant 0 : index
      %c0_13 = arith.constant 0 : index
      %13 = vector.load %arg4[%c0_12, %c0_13] : memref<1x256xf32, #tpu.memory_space<vmem>>, vector<1x256xf32>
      %14 = vector.broadcast %13 : vector<1x256xf32> to vector<8x256xf32>
      %15 = arith.addf %12, %14 : vector<8x256xf32>
      %cst_14 = arith.constant 0.000000e+00 : f32
      %16 = vector.broadcast %cst_14 : f32 to vector<8x256xf32>
      %17 = arith.maximumf %15, %16 : vector<8x256xf32>
      %c0_15 = arith.constant 0 : index
      %c0_16 = arith.constant 0 : index
      %18 = vector.load %arg5[%c0_15, %c0_16] : memref<1x256xf32, #tpu.memory_space<vmem>>, vector<1x256xf32>
      %19 = vector.broadcast %18 : vector<1x256xf32> to vector<8x256xf32>
      %20 = arith.mulf %17, %19 : vector<8x256xf32>
      %21 = vector.extract_strided_slice %20 {offsets = [0, 0], sizes = [8, 128], strides = [1, 1]} : vector<8x256xf32> to vector<8x128xf32>
      %22 = vector.extract_strided_slice %20 {offsets = [0, 128], sizes = [8, 128], strides = [1, 1]} : vector<8x256xf32> to vector<8x128xf32>
      %cst_17 = arith.constant 5.000000e-01 : f32
      %23 = vector.broadcast %cst_17 : f32 to vector<8x128xf32>
      %24 = arith.mulf %23, %22 : vector<8x128xf32>
      %25 = math.exp %24 : vector<8x128xf32>
      %c0_18 = arith.constant 0 : index
      %c0_19 = arith.constant 0 : index
      %26 = vector.load %arg6[%c0_18, %c0_19] : memref<8x128xf32, #tpu.memory_space<vmem>>, vector<8x128xf32>
      %27 = arith.mulf %25, %26 : vector<8x128xf32>
      %28 = arith.addf %21, %27 : vector<8x128xf32>
      %c0_20 = arith.constant 0 : index
      %c0_21 = arith.constant 0 : index
      %29 = vector.load %arg7[%c0_20, %c0_21] : memref<8x384xf32, #tpu.memory_space<vmem>>, vector<8x128xf32>
      tpu.vector_store %arg7[%c0_20, %c0_21], %28 {strides = array<i32>} : memref<8x384xf32, #tpu.memory_space<vmem>>, vector<8x128xf32>,
      %c0_22 = arith.constant 0 : index
      %c128 = arith.constant 128 : index
      %30 = vector.load %arg7[%c0_22, %c128] : memref<8x384xf32, #tpu.memory_space<vmem>>, vector<8x128xf32>
      tpu.vector_store %arg7[%c0_22, %c128], %21 {strides = array<i32>} : memref<8x384xf32, #tpu.memory_space<vmem>>, vector<8x128xf32>,
      %c0_23 = arith.constant 0 : index
      %c256 = arith.constant 256 : index
      %31 = vector.load %arg7[%c0_23, %c256] : memref<8x384xf32, #tpu.memory_space<vmem>>, vector<8x128xf32>
      tpu.vector_store %arg7[%c0_23, %c256], %25 {strides = array<i32>} : memref<8x384xf32, #tpu.memory_space<vmem>>, vector<8x128xf32>,
    } else {
    }
    return
  }
  func.func @transform_0(%arg0: i32, %arg1: i32) -> (i32, i32) {
    %c0_i32 = arith.constant 0 : i32
    %c0_i32_0 = arith.constant 0 : i32
    return %arg1, %c0_i32 : i32, i32
  }
  func.func @transform_1(%arg0: i32, %arg1: i32) -> (i32, i32) {
    %c0_i32 = arith.constant 0 : i32
    return %arg0, %arg1 : i32, i32
  }
  func.func @transform_2(%arg0: i32, %arg1: i32) -> (i32, i32) {
    %c0_i32 = arith.constant 0 : i32
    %c0_i32_0 = arith.constant 0 : i32
    %c0_i32_1 = arith.constant 0 : i32
    return %c0_i32, %c0_i32_0 : i32, i32
  }
  func.func @transform_3(%arg0: i32, %arg1: i32) -> (i32, i32) {
    %c0_i32 = arith.constant 0 : i32
    %c0_i32_0 = arith.constant 0 : i32
    %c0_i32_1 = arith.constant 0 : i32
    return %c0_i32, %c0_i32_0 : i32, i32
  }
  func.func @transform_4(%arg0: i32, %arg1: i32) -> (i32, i32) {
    %c0_i32 = arith.constant 0 : i32
    %c0_i32_0 = arith.constant 0 : i32
    return %arg0, %c0_i32 : i32, i32
  }
  func.func @transform_5(%arg0: i32, %arg1: i32) -> (i32, i32) {
    %c0_i32 = arith.constant 0 : i32
    %c0_i32_0 = arith.constant 0 : i32
    return %arg0, %c0_i32 : i32, i32
  }
}

</mosaic_0001>

<llo_original>
// kernel: tpu_custom_call.1
$region0: #{tpu_custom_call.1}
  #allocation0 [shape = 'u32[]', space=smem, size = 0x4, offset = 0x4, fixed_abs, tag = 'smem constant byte address 0x4 - core index']
  #allocation1 [shape = 'u32[144,128]{1,0:T(1,128)}', space=vmem, size = 0x12000, scoped, tag = 'internal scratch']
  #allocation2 [shape = 'f32[8,256]{1,0:T(8,128)}', space=vmem, size = 0x2000, scoped, tag = 'scratch operand']
  %s0 = inlined_call_operand.hbm [shape: f32[8,256], index: 0, kind: input, shape index: {}]
  %s1 = inlined_call_operand.hbm [shape: f32[8,8], index: 1, kind: input, shape index: {}]
  %s2 = inlined_call_operand.vmem [shape: f32[1,256], index: 2, kind: input, shape index: {}]
  %s3 = inlined_call_operand.vmem [shape: f32[1,256], index: 3, kind: input, shape index: {}]
  %s4 = inlined_call_operand.hbm [shape: f32[8,128], index: 4, kind: input, shape index: {}]
  %s5 = inlined_call_operand.hbm [shape: f32[8,384], index: 5, kind: output, shape index: {}]
  %s6 = sld [smem:[#allocation0]]
  $region50: #{tpu_custom_call.1} parent=0
    _
  %s8 = ssub.s32 1, %s6
  %s9 = scalar_select 0, %s8, %s6
  $region1: #{tpu_custom_call.1} parent=0
    #allocation3 [shape = 'u8[8192]{0}', space=vmem, size = 0x2000, scoped, tag = 'input window, operand 0, single buffered']
    #allocation4 [shape = 's32[1]{0}', space=sflag, size = 0x4, scoped, tag = 'scoped memory for tpu_custom_call.1']
    #allocation5 [shape = 's32[1]{0}', space=sflag, size = 0x4, scoped, tag = 'scoped memory for tpu_custom_call.1']
    #allocation6 [shape = 'u8[4096]{0}', space=vmem, size = 0x1000, scoped, tag = 'input window, operand 1, single buffered']
    #allocation7 [shape = 's32[1]{0}', space=sflag, size = 0x4, scoped, tag = 'scoped memory for tpu_custom_call.1']
    #allocation8 [shape = 'u8[4096]{0}', space=vmem, size = 0x1000, scoped, tag = 'input window, operand 4, single buffered']
    #allocation9 [shape = 'u8[12288]{0}', space=vmem, size = 0x3000, scoped, tag = 'output window, operand 0, single buffered']
    %10 = vsyncpa [#allocation4], 0
    %11 = vsyncpa [#allocation7], 0
    %12 = vsyncpa [#allocation5], 0
    // Predicated region
    $region2: #{tpu_custom_call.1} parent=1 // pred_check
      _
    $region3: #{tpu_custom_call.1} parent=1 // pred_check_branch
      %14 = sbr.rel (0) target = $region5
    $region4: #{tpu_custom_call.1} parent=1 // pred_region
      %s16 = ssub.s32 256, 256
      %17 = vsyncadd [#allocation4], %s16
      %s19 = sshll.u32 [#allocation3], 4
      %s20 = int_to_ptr.vmem [resolvable:$true] %s19
      %22 = dma.hbm_to_vmem [thread:$0]  %s0, 256, %s20, [#allocation4]
    $region5: #{tpu_custom_call.1} parent=1 // pred_fallthru
      _
    // Predicated region
    $region6: #{tpu_custom_call.1} parent=1 // pred_check
      _
    $region7: #{tpu_custom_call.1} parent=1 // pred_check_branch
      %24 = sbr.rel (0) target = $region9
    $region8: #{tpu_custom_call.1} parent=1 // pred_region
      %s26 = ssub.s32 128, 128
      %27 = vsyncadd [#allocation7], %s26
      %s29 = sshll.u32 [#allocation6], 4
      %s30 = int_to_ptr.vmem [resolvable:$true] %s29
      %32 = dma.hbm_to_vmem [thread:$0]  %s1, 128, %s30, [#allocation7]
    $region9: #{tpu_custom_call.1} parent=1 // pred_fallthru
      _
    // Predicated region
    $region10: #{tpu_custom_call.1} parent=1 // pred_check
      _
    $region11: #{tpu_custom_call.1} parent=1 // pred_check_branch
      %34 = sbr.rel (0) target = $region13
    $region12: #{tpu_custom_call.1} parent=1 // pred_region
      _
    $region13: #{tpu_custom_call.1} parent=1 // pred_fallthru
      _
    // Predicated region
    $region14: #{tpu_custom_call.1} parent=1 // pred_check
      _
    $region15: #{tpu_custom_call.1} parent=1 // pred_check_branch
      %36 = sbr.rel (0) target = $region17
    $region16: #{tpu_custom_call.1} parent=1 // pred_region
      _
    $region17: #{tpu_custom_call.1} parent=1 // pred_fallthru
      _
    // Predicated region
    $region18: #{tpu_custom_call.1} parent=1 // pred_check
      _
    $region19: #{tpu_custom_call.1} parent=1 // pred_check_branch
      %38 = sbr.rel (0) target = $region21
    $region20: #{tpu_custom_call.1} parent=1 // pred_region
      %s40 = ssub.s32 128, 128
      %41 = vsyncadd [#allocation7], %s40
      %s43 = sshll.u32 [#allocation8], 4
      %s44 = int_to_ptr.vmem [resolvable:$true] %s43
      %46 = dma.hbm_to_vmem [thread:$0]  %s4, 128, %s44, [#allocation7]
    $region21: #{tpu_custom_call.1} parent=1 // pred_fallthru
      _
    // Predicated region
    $region22: #{tpu_custom_call.1} parent=1 // pred_check
      _
    $region23: #{tpu_custom_call.1} parent=1 // pred_check_branch
      %48 = sbr.rel (0) target = $region25
    $region24: #{tpu_custom_call.1} parent=1 // pred_region
      %49 = dma.done [#allocation4], 256
    $region25: #{tpu_custom_call.1} parent=1 // pred_fallthru
      _
    // Predicated region
    $region26: #{tpu_custom_call.1} parent=1 // pred_check
      _
    $region27: #{tpu_custom_call.1} parent=1 // pred_check_branch
      %51 = sbr.rel (0) target = $region29
    $region28: #{tpu_custom_call.1} parent=1 // pred_region
      %52 = dma.done [#allocation7], 128
    $region29: #{tpu_custom_call.1} parent=1 // pred_fallthru
      _
    // Predicated region
    $region30: #{tpu_custom_call.1} parent=1 // pred_check
      _
    $region31: #{tpu_custom_call.1} parent=1 // pred_check_branch
      %54 = sbr.rel (0) target = $region33
    $region32: #{tpu_custom_call.1} parent=1 // pred_region
      %55 = dma.done [#allocation7], 128
    $region33: #{tpu_custom_call.1} parent=1 // pred_fallthru
      _
    %p56 = scmp.eq.s32.totalorder 0, 0
    // Predicated region
    $region34: #{tpu_custom_call.1} parent=1 // pred_check
      %p57 = pneg %p56
    $region35: #{tpu_custom_call.1} parent=1 // pred_check_branch
      %59 = sbr.rel (%p57) target = $region37
    $region36: #{tpu_custom_call.1} parent=1 // pred_region
      %60 = vst [vmem:[#allocation2] sm:$0xff] 0.0
      %61 = vst [vmem:[#allocation2 + $0x8] sm:$0xff] 0.0
    $region37: #{tpu_custom_call.1} parent=1 // pred_fallthru
      _
    %v62 = vld [vmem:[#allocation2] sm:$0xff]
    %v63 = vld [vmem:[#allocation2 + $0x8] sm:$0xff]
    %v64 = vld [vmem:[#allocation6] sm:$0xff]
    %v65 = vld [vmem:[#allocation3] sm:$0xff]
    %v66 = vld [vmem:[#allocation3 + $0x8] sm:$0xff]
    %vm67 = vcmask 64512
    %v69 = vsel %vm67, %v64, 0
    %71 = vmatprep.subr.mxu0 0.0
    %72 = vmatpush1.msra.mxu0 0.0
    %73 = vmatprep.subr.mxu0 0.0
    %74 = vmatpush1.msra.mxu0 0.0
    %75 = vmatprep.subr.mxu0 0.0
    %76 = vmatpush1.msra.mxu0 0.0
    %77 = vmatprep.subr.mxu0 0.0
    %78 = vmatpush1.msra.mxu0 0.0
    %79 = vmatprep.subr.mxu0 0.0
    %80 = vmatpush1.msra.mxu0 0.0
    %81 = vmatprep.subr.mxu0 0.0
    %82 = vmatpush1.msra.mxu0 0.0
    %83 = vmatprep.subr.mxu0 0.0
    %84 = vmatpush1.msra.mxu0 0.0
    %85 = vmatprep.subr.mxu0 0.0
    %86 = vmatpush1.msra.mxu0 0.0
    %87 = vmatprep.subr.mxu0 0.0
    %88 = vmatpush1.msra.mxu0 0.0
    %89 = vmatprep.subr.mxu0 0.0
    %90 = vmatpush1.msra.mxu0 0.0
    %91 = vmatprep.subr.mxu0 0.0
    %92 = vmatpush1.msra.mxu0 0.0
    %93 = vmatprep.subr.mxu0 0.0
    %94 = vmatpush1.msra.mxu0 0.0
    %95 = vmatprep.subr.mxu0 0.0
    %96 = vmatpush1.msra.mxu0 0.0
    %97 = vmatprep.subr.mxu0 0.0
    %98 = vmatpush1.msra.mxu0 0.0
    %99 = vmatprep.subr.mxu0 0.0
    %100 = vmatpush1.msra.mxu0 0.0
    %101 = vmatprep.subr.mxu0 %v66
    %102 = vmatpush1.msra.mxu0 %v65
    %103 = vmatprep.subr.mxu0 0.0
    %104 = vmatpush2.msra.mxu0 0.0
    %105 = vmatprep.subr.mxu0 0.0
    %106 = vmatpush2.msra.mxu0 0.0
    %107 = vmatprep.subr.mxu0 0.0
    %108 = vmatpush2.msra.mxu0 0.0
    %109 = vmatprep.subr.mxu0 0.0
    %110 = vmatpush2.msra.mxu0 0.0
    %111 = vmatprep.subr.mxu0 0.0
    %112 = vmatpush2.msra.mxu0 0.0
    %113 = vmatprep.subr.mxu0 0.0
    %114 = vmatpush2.msra.mxu0 0.0
    %115 = vmatprep.subr.mxu0 0.0
    %116 = vmatpush2.msra.mxu0 0.0
    %117 = vmatprep.subr.mxu0 0.0
    %118 = vmatpush2.msra.mxu0 0.0
    %119 = vmatprep.subr.mxu0 0.0
    %120 = vmatpush2.msra.mxu0 0.0
    %121 = vmatprep.subr.mxu0 0.0
    %122 = vmatpush2.msra.mxu0 0.0
    %123 = vmatprep.subr.mxu0 0.0
    %124 = vmatpush2.msra.mxu0 0.0
    %125 = vmatprep.subr.mxu0 0.0
    %126 = vmatpush2.msra.mxu0 0.0
    %127 = vmatprep.subr.mxu0 0.0
    %128 = vmatpush2.msra.mxu0 0.0
    %129 = vmatprep.subr.mxu0 0.0
    %130 = vmatpush2.msra.mxu0 0.0
    %131 = vmatprep.subr.mxu0 0.0
    %132 = vmatpush2.msra.mxu0 0.0
    %133 = vmatprep.subr.mxu0 0.0
    %134 = vmatpush2.msra.mxu0 0.0
    %135 = vmatprep.mubr.f32.mxu0 0.0
    %136 = vmatmul.mubr.f32.gmra.mxu0 %v69
    %v137 = vpop.f32.mrf.mxu0
    %v138 = vadd.f32 0.0, %v137
    %v139 = vpop.f32.mrf.mxu0
    %v140 = vadd.f32 0.0, %v139
    %141 = vdwg.mxu0
    %v142 = vadd.f32 %v62, %v138
    %v143 = vadd.f32 %v63, %v140
    %144 = vst [vmem:[#allocation2] sm:$0xff] %v142
    %145 = vst [vmem:[#allocation2 + $0x8] sm:$0xff] %v143
    // Predicated region
    $region38: #{tpu_custom_call.1} parent=1 // pred_check
      %p146 = pneg %p56
    $region39: #{tpu_custom_call.1} parent=1 // pred_check_branch
      %148 = sbr.rel (%p146) target = $region41
    $region40: #{tpu_custom_call.1} parent=1 // pred_region
      %v149 = vld [vmem:[#allocation2] sm:$0xff]
      %v150 = vld [vmem:[#allocation2 + $0x8] sm:$0xff]
      %v151 = vld [vmem:[%s2] sm:$0x3]
      %v153 = vlaneseq
      %v154 = vshrl.u32 %v153, 7
      %v155 = vsub.s32 0, %v154
      %v156 = vrot.slane %v151, %v155
      %v157 = vlaneseq
      %v158 = vshrl.u32 %v157, 7
      %v159 = vsub.s32 1, %v158
      %v160 = vrot.slane %v151, %v159
      %v163 = vadd.f32 %v149, %v156
      %v164 = vadd.f32 %v150, %v160
      %v165 = vmax.f32 %v163, 0.0
      %v166 = vmax.f32 %v164, 0.0
      %v167 = vld [vmem:[%s3] sm:$0x3]
      %v169 = vlaneseq
      %v170 = vshrl.u32 %v169, 7
      %v171 = vsub.s32 0, %v170
      %v172 = vrot.slane %v167, %v171
      %v173 = vlaneseq
      %v174 = vshrl.u32 %v173, 7
      %v175 = vsub.s32 1, %v174
      %v176 = vrot.slane %v167, %v175
      %v179 = vmul.f32 %v165, %v172
      %v180 = vmul.f32 %v166, %v176
      %v181 = vmul.f32 %v180, 0.5
      %v182 = vmul.f32 %v181, 1.442695
      %v183 = vpow.pop %v182
      %v184 = vld [vmem:[#allocation8] sm:$0xff]
      %v185 = vmul.f32 %v183, %v184
      %v186 = vadd.f32 %v179, %v185
      %187 = vst [vmem:[#allocation9] sm:$0xff] %v186
      %188 = vst [vmem:[#allocation9 + $0x8] sm:$0xff] %v179
      %189 = vst [vmem:[#allocation9 + $0x10] sm:$0xff] %v183
    $region41: #{tpu_custom_call.1} parent=1 // pred_fallthru
      _
    // Predicated region
    $region42: #{tpu_custom_call.1} parent=1 // pred_check
      _
    $region43: #{tpu_custom_call.1} parent=1 // pred_check_branch
      %191 = sbr.rel (0) target = $region45
    $region44: #{tpu_custom_call.1} parent=1 // pred_region
      %s193 = ssub.s32 384, 384
      %194 = vsyncadd [#allocation5], %s193
      %s196 = sshll.u32 [#allocation9], 4
      %s197 = int_to_ptr.vmem [resolvable:$true] %s196
      %199 = dma.vmem_to_hbm [thread:$0]  %s197, 384, %s5, [#allocation5]
    $region45: #{tpu_custom_call.1} parent=1 // pred_fallthru
      _
    // Predicated region
    $region46: #{tpu_custom_call.1} parent=1 // pred_check
      _
    $region47: #{tpu_custom_call.1} parent=1 // pred_check_branch
      %201 = sbr.rel (0) target = $region49
    $region48: #{tpu_custom_call.1} parent=1 // pred_region
      %202 = dma.done [#allocation5], 384
    $region49: #{tpu_custom_call.1} parent=1 // pred_fallthru
      _
    %203 = vsyncpa [#allocation4], 1
    %204 = vsyncpa [#allocation7], 1
    %205 = vsyncpa [#allocation5], 1

</llo_original>
